<compile_context>
chip_gen: v7x
topology: tpu7x:2x2x1
jax: 0.10.0
libtpu: 0.0.40
codegen_flags: <defaults>
</compile_context>

<pallas_src>
import functools
import math

import jax
import jax.numpy as jnp
import numpy as np
from jax import lax
from jax.experimental import pallas as pl
from jax.experimental.pallas import tpu as pltpu


# ----------------------------------------------------------------------------
# Generation-aware knobs
# ----------------------------------------------------------------------------
@functools.lru_cache(maxsize=None)
def _vmem_limit_bytes():
    """~3/4 of physical VMEM: 96 MiB on v5e/v6e (128 MiB), 48 MiB on v7x (64 MiB)."""
    cap = None
    try:
        cap = int(pltpu.get_tpu_info().vmem_capacity_bytes)
    except Exception:
        cap = None
    if not cap or cap <= 0:
        cap = 64 * 1024 * 1024          # conservative (v7x-sized) fallback
    return int(min(cap * 3 // 4, 100 * 1024 * 1024))


@functools.lru_cache(maxsize=None)
def _is_v5e_like():
    try:
        kind = jax.devices()[0].device_kind.lower()
    except Exception:
        return False
    return ("v5 lite" in kind) or ("v5lite" in kind) or ("v5e" in kind)


def _pick_tile(dim, candidates):
    """Largest candidate that evenly divides `dim`, else the full dim."""
    for c in candidates:
        if c <= dim and dim % c == 0:
            return c
    return dim


_TM_CANDIDATES = (512, 256, 128, 64, 32, 16, 8)
_TN_CANDIDATES = (512, 256, 128)
_TK_CANDIDATES = (512, 256, 128)


# ----------------------------------------------------------------------------
# Tiled linear kernel body:  out = x @ w + b   with an f32 VMEM accumulator.
# `red_axis` selects which grid axis is the contraction (always the last one).
# ----------------------------------------------------------------------------
def _linear_kernel(x_ref, w_ref, b_ref, o_ref, acc_ref, *, red_axis):
    k = pl.program_id(red_axis)

    @pl.when(k == 0)
    def _init():
        acc_ref[...] = jnp.zeros_like(acc_ref)

    acc_ref[...] += jnp.dot(x_ref[...], w_ref[...],
                            preferred_element_type=jnp.float32)

    @pl.when(k == pl.num_programs(red_axis) - 1)
    def _finalize():
        acc = acc_ref[...] + b_ref[...].astype(jnp.float32)
        o_ref[...] = acc.astype(o_ref.dtype)


def pallas_linear(x, w, b):
    """y = x @ w + b.   x: (M, K), w: (K, N), b: (N,) -> (M, N)."""
    M, K = x.shape
    N = w.shape[1]
    tm = _pick_tile(M, _TM_CANDIDATES)
    tn = _pick_tile(N, _TN_CANDIDATES)
    tk = _pick_tile(K, _TK_CANDIDATES)
    grid = (M // tm, N // tn, K // tk)
    return pl.pallas_call(
        functools.partial(_linear_kernel, red_axis=2),
        out_shape=jax.ShapeDtypeStruct((M, N), x.dtype),
        grid_spec=pltpu.PrefetchScalarGridSpec(
            num_scalar_prefetch=0,
            grid=grid,
            in_specs=[
                pl.BlockSpec((tm, tk), lambda i, j, k: (i, k)),
                pl.BlockSpec((tk, tn), lambda i, j, k: (k, j)),
                pl.BlockSpec((1, tn), lambda i, j, k: (0, j)),
            ],
            out_specs=pl.BlockSpec((tm, tn), lambda i, j, k: (i, j)),
            scratch_shapes=[pltpu.VMEM((tm, tn), jnp.float32)],
        ),
        compiler_params=pltpu.CompilerParams(
            dimension_semantics=("parallel", "parallel", "arbitrary"),
            vmem_limit_bytes=_vmem_limit_bytes(),
        ),
    )(x, w, b.reshape(1, N))


def pallas_qkv_linear(x, w, b):
    """(M, C) @ (C, 3C) + (3C,) -> (3, M, C): q/k/v land in separate planes.

    The plane (q/k/v) index is a leading parallel grid axis that only shifts
    the weight/bias column block -- no reshape or transpose of activations.
    """
    M, C = x.shape
    assert w.shape == (C, 3 * C)
    tn = None
    for c in _TN_CANDIDATES:
        if c <= C and C % c == 0:
            tn = c
            break
    if tn is None:
        # Can't carve 128-aligned per-plane column tiles out of (C, 3C):
        # fall back to one fused linear plus a single XLA split/stack pass.
        qkv = pallas_linear(x, w, b)                      # (M, 3C)
        return jnp.stack(jnp.split(qkv, 3, axis=-1), axis=0)

    tm = _pick_tile(M, _TM_CANDIDATES)
    tk = _pick_tile(C, _TK_CANDIDATES)
    ncol = C // tn
    grid = (3, M // tm, ncol, C // tk)
    return pl.pallas_call(
        functools.partial(_linear_kernel, red_axis=3),
        out_shape=jax.ShapeDtypeStruct((3, M, C), x.dtype),
        grid_spec=pltpu.PrefetchScalarGridSpec(
            num_scalar_prefetch=0,
            grid=grid,
            in_specs=[
                pl.BlockSpec((tm, tk), lambda p, i, j, k: (i, k)),
                pl.BlockSpec((tk, tn), lambda p, i, j, k: (k, p * ncol + j)),
                pl.BlockSpec((1, tn), lambda p, i, j, k: (0, p * ncol + j)),
            ],
            out_specs=pl.BlockSpec((None, tm, tn), lambda p, i, j, k: (p, i, j)),
            scratch_shapes=[pltpu.VMEM((tm, tn), jnp.float32)],
        ),
        compiler_params=pltpu.CompilerParams(
            dimension_semantics=("parallel", "parallel", "parallel", "arbitrary"),
            vmem_limit_bytes=_vmem_limit_bytes(),
        ),
    )(x, w, b.reshape(1, 3 * C))


# ----------------------------------------------------------------------------
# Flash-style causal attention over head groups.
#   grid = (B, H // hb, lower-triangular (qi, kv) schedule)
# ----------------------------------------------------------------------------
def _head_group(H, D):
    """Smallest divisor hb of H with hb*D a multiple of 128, else H (full C)."""
    for hb in range(1, H + 1):
        if H % hb == 0 and (hb * D) % 128 == 0:
            return hb
    return H


def pallas_flash_attention(qkv3, *, n_head, seq_len):
    """qkv3: (3, B*T, C) -> (B*T, C), causal softmax attention."""
    three, M, C = qkv3.shape
    assert three == 3 and M % seq_len == 0
    T = seq_len
    B = M // T
    H = n_head
    D = C // H
    hb = _head_group(H, D)
    HG = H // hb
    hbD = hb * D

    # Attention tile: 128 on v5e-class parts, 256 on v6e/v7x; requires t | T.
    t_cands = (128,) if _is_v5e_like() else (256, 128)
    t = _pick_tile(T, t_cands)
    nt = T // t

    # Lower-triangular (qi, kv) schedule: no grid steps for fully-masked
    # blocks.  Within each qi, kv runs 0..qi so the diagonal block is last.
    qi_list, kv_list = [], []
    for qi in range(nt):
        for kv in range(qi + 1):
            qi_list.append(qi)
            kv_list.append(kv)
    qi_tbl = jnp.asarray(np.asarray(qi_list, np.int32))
    kv_tbl = jnp.asarray(np.asarray(kv_list, np.int32))
    n_tri = len(qi_list)

    scale = 1.0 / math.sqrt(D)

    def kernel(qi_t, kv_t, q_ref, k_ref, v_ref, o_ref, m_sc, l_sc, acc_sc):
        s_id = pl.program_id(2)
        qi = qi_t[s_id]
        kv = kv_t[s_id]

        @pl.when(kv == 0)
        def _init():
            m_sc[...] = jnp.full(m_sc.shape, -jnp.inf, m_sc.dtype)
            l_sc[...] = jnp.zeros_like(l_sc)
            acc_sc[...] = jnp.zeros_like(acc_sc)

        def update(h, masked):
            q = q_ref[:, h * D:(h + 1) * D]                 # (t, D), static slice
            k = k_ref[:, h * D:(h + 1) * D]
            v = v_ref[:, h * D:(h + 1) * D]
            # s = q @ k^T without materializing a transposed copy of k.
            s = lax.dot_general(q, k, (((1,), (1,)), ((), ())),
                                preferred_element_type=jnp.float32)
            s = s * scale                                    # scale in f32 (bf16-safe)
            if masked:                                       # only the diagonal block
                r = lax.broadcasted_iota(jnp.int32, (t, t), 0)
                c = lax.broadcasted_iota(jnp.int32, (t, t), 1)
                s = jnp.where(c <= r, s, -jnp.inf)
            m_prev = m_sc[h]
            m_new = jnp.maximum(m_prev, jnp.max(s, axis=-1, keepdims=True))
            alpha = jnp.exp(m_prev - m_new)
            p = jnp.exp(s - m_new)
            l_sc[h] = alpha * l_sc[h] + jnp.sum(p, axis=-1, keepdims=True)
            acc_sc[h] = alpha * acc_sc[h] + jnp.dot(
                p.astype(v.dtype), v, preferred_element_type=jnp.float32)
            m_sc[h] = m_new

        @pl.when(kv < qi)                       # strictly below diagonal: no mask
        def _off_diag():
            for h in range(hb):
                update(h, masked=False)

        @pl.when(kv == qi)                      # diagonal block: mask + finalize
        def _diag():
            for h in range(hb):
                update(h, masked=True)
                inv_l = 1.0 / l_sc[h]           # exact reciprocal ((t,1): cheap)
                o_ref[:, h * D:(h + 1) * D] = (acc_sc[h] * inv_l).astype(o_ref.dtype)
            # The full (t, hb*D >= 128) output block is DMA'd back lane-dense.

    blk_in = (None, t, hbD)

    def q_map(b, hg, s, qi_t, kv_t):
        return (0, b * nt + qi_t[s], hg)

    def k_map(b, hg, s, qi_t, kv_t):
        return (1, b * nt + kv_t[s], hg)

    def v_map(b, hg, s, qi_t, kv_t):
        return (2, b * nt + kv_t[s], hg)

    def o_map(b, hg, s, qi_t, kv_t):
        return (b * nt + qi_t[s], hg)

    return pl.pallas_call(
        kernel,
        out_shape=jax.ShapeDtypeStruct((M, C), qkv3.dtype),
        grid_spec=pltpu.PrefetchScalarGridSpec(
            num_scalar_prefetch=2,
            grid=(B, HG, n_tri),
            in_specs=[pl.BlockSpec(blk_in, q_map),
                      pl.BlockSpec(blk_in, k_map),
                      pl.BlockSpec(blk_in, v_map)],
            out_specs=pl.BlockSpec((t, hbD), o_map),
            scratch_shapes=[pltpu.VMEM((hb, t, 1), jnp.float32),   # running max
                            pltpu.VMEM((hb, t, 1), jnp.float32),   # running sum
                            pltpu.VMEM((hb, t, D), jnp.float32)],  # output acc
        ),
        compiler_params=pltpu.CompilerParams(
            dimension_semantics=("parallel", "parallel", "arbitrary"),
            vmem_limit_bytes=_vmem_limit_bytes(),
        ),
    )(qi_tbl, kv_tbl, qkv3, qkv3, qkv3)


# ----------------------------------------------------------------------------
# Module forward: CausalSelfAttention
# ----------------------------------------------------------------------------
def causal_self_attention(x, params, n_head):
    """x: (B, T, C) -> (B, T, C).  Matches CausalSelfAttention.forward."""
    B, T, C = x.shape
    # c_attn: (B*T, C) @ (C, 3C) + (3C,)  ->  (3, B*T, C)  (q/k/v planes)
    qkv3 = pallas_qkv_linear(x.reshape(B * T, C),
                             params["w_attn"], params["b_attn"])
    # Flash causal attention; output is emitted directly in (B*T, C) layout.
    y = pallas_flash_attention(qkv3, n_head=n_head, seq_len=T)
    # c_proj: plain tiled linear with full-depth contraction.
    y = pallas_linear(y, params["w_proj"], params["b_proj"])
    return y.reshape(B, T, C)


# ----------------------------------------------------------------------------
# Pure-JAX reference (for in-script correctness check)
# ----------------------------------------------------------------------------
def reference(x, params, n_head):
    B, T, C = x.shape
    D = C // n_head
    qkv = x.reshape(B * T, C) @ params["w_attn"] + params["b_attn"]
    qkv = qkv.reshape(B, T, 3, n_head, D)
    q = qkv[:, :, 0].transpose(0, 2, 1, 3)
    k = qkv[:, :, 1].transpose(0, 2, 1, 3)
    v = qkv[:, :, 2].transpose(0, 2, 1, 3)
    s = jnp.einsum("bhtd,bhsd->bhts", q, k) / math.sqrt(D)
    mask = jnp.tril(jnp.ones((T, T), dtype=bool))
    s = jnp.where(mask[None, None], s, -jnp.inf)
    p = jax.nn.softmax(s, axis=-1)
    y = jnp.einsum("bhts,bhsd->bhtd", p, v)
    y = y.transpose(0, 2, 1, 3).reshape(B * T, C)
    y = y @ params["w_proj"] + params["b_proj"]
    return y.reshape(B, T, C)


if __name__ == "__main__":
    def make_inputs(B, T, C, seed, dtype=jnp.float32):
        key = jax.random.PRNGKey(seed)
        k1, k2, k3, k4, k5 = jax.random.split(key, 5)
        params = {
            "w_attn": (jax.random.normal(k1, (C, 3 * C), jnp.float32) * 0.02).astype(dtype),
            "b_attn": (jax.random.normal(k2, (3 * C,), jnp.float32) * 0.02).astype(dtype),
            "w_proj": (jax.random.normal(k3, (C, C), jnp.float32) * 0.02).astype(dtype),
            "b_proj": (jax.random.normal(k4, (C,), jnp.float32) * 0.02).astype(dtype),
        }
        x = jax.random.normal(k5, (B, T, C), jnp.float32).astype(dtype)
        return x, params

    # 1) Tiny config (single-block fallback paths): B=2, T=8, C=128, 4 heads.
    x, params = make_inputs(2, 8, 128, seed=0)
    out = jax.block_until_ready(causal_self_attention(x, params, n_head=4))
    ref = reference(x, params, 4)
    assert out.shape == x.shape
    assert jnp.allclose(out, ref, atol=1e-3, rtol=1e-3), "tiny f32 mismatch"

    # 2) Medium config (multi-block flash schedule, tiled matmuls, head groups):
    #    B=2, T=512, C=256, 4 heads -> head_dim=64, 2 heads per 128-lane group.
    x, params = make_inputs(2, 512, 256, seed=1)
    out = jax.block_until_ready(causal_self_attention(x, params, n_head=4))
    ref = reference(x, params, 4)
    assert jnp.allclose(out, ref, atol=2e-3, rtol=2e-2), "medium f32 mismatch"

    # 3) bf16 path at the medium config (bf16 MXU operands, f32 accumulation /
    #    softmax statistics).  Compared against an f32 reference run on the
    #    bf16-rounded inputs so only in-kernel rounding is measured.
    xb = x.astype(jnp.bfloat16)
    pb = jax.tree.map(lambda a: a.astype(jnp.bfloat16), params)
    outb = jax.block_until_ready(causal_self_attention(xb, pb, n_head=4))
    refb = reference(xb.astype(jnp.float32),
                     jax.tree.map(lambda a: a.astype(jnp.float32), pb), 4)
    assert outb.shape == x.shape
    assert jnp.allclose(outb.astype(jnp.float32), refb,
                        atol=2e-2, rtol=2e-1), "bf16 mismatch"

    print("KERNEL_OK")
</pallas_src>

<mosaic_0001>
module attributes {stable_mosaic.version = 11 : i64} {
  func.func @_linear_kernel(%arg0: i32, %arg1: i32, %arg2: i32, %arg3: i32, %arg4: memref<16x128xf32, #tpu.memory_space<vmem>>, %arg5: memref<128x128xf32, #tpu.memory_space<vmem>>, %arg6: memref<1x128xf32, #tpu.memory_space<vmem>>, %arg7: memref<1x16x128xf32, #tpu.memory_space<vmem>>, %arg8: memref<16x128xf32, #tpu.memory_space<vmem>>) attributes {dimension_semantics = [#tpu.dimension_semantics<parallel>, #tpu.dimension_semantics<parallel>, #tpu.dimension_semantics<parallel>, #tpu.dimension_semantics<arbitrary>], iteration_bounds = array<i64: 3, 1, 1, 1>, scalar_prefetch = 0 : i64, scratch_operands = 1 : i64, tpu.core_type = #tpu.core_type<tc>, window_params = [{transform_indices = @transform_0, window_bounds = array<i64: 16, 128>}, {transform_indices = @transform_1, window_bounds = array<i64: 128, 128>}, {transform_indices = @transform_2, window_bounds = array<i64: 1, 128>}, {transform_indices = @transform_3, window_bounds = array<i64: 1, 16, 128>}]} {
    %c0_i32 = arith.constant 0 : i32
    %0 = arith.cmpi eq, %arg3, %c0_i32 : i32
    %1 = arith.extui %0 : i1 to i32
    %c0_i32_0 = arith.constant 0 : i32
    %2 = arith.cmpi ne, %1, %c0_i32_0 : i32
    scf.if %2 {
      %cst_10 = arith.constant 0.000000e+00 : f32
      %12 = vector.broadcast %cst_10 : f32 to vector<16x128xf32>
      %c0_11 = arith.constant 0 : index
      %c0_12 = arith.constant 0 : index
      %13 = vector.load %arg8[%c0_11, %c0_12] : memref<16x128xf32, #tpu.memory_space<vmem>>, vector<16x128xf32>
      tpu.vector_store %arg8[%c0_11, %c0_12], %12 {strides = array<i32>} : memref<16x128xf32, #tpu.memory_space<vmem>>, vector<16x128xf32>,
    } else {
    }
    %c0 = arith.constant 0 : index
    %c0_1 = arith.constant 0 : index
    %3 = vector.load %arg8[%c0, %c0_1] : memref<16x128xf32, #tpu.memory_space<vmem>>, vector<16x128xf32>
    %c0_2 = arith.constant 0 : index
    %c0_3 = arith.constant 0 : index
    %4 = vector.load %arg4[%c0_2, %c0_3] : memref<16x128xf32, #tpu.memory_space<vmem>>, vector<16x128xf32>
    %c0_4 = arith.constant 0 : index
    %c0_5 = arith.constant 0 : index
    %5 = vector.load %arg5[%c0_4, %c0_5] : memref<128x128xf32, #tpu.memory_space<vmem>>, vector<128x128xf32>
    %cst = arith.constant dense<0.000000e+00> : vector<16x128xf32>
    %6 = tpu.matmul %4, %5, %cst {dimension_numbers = #tpu.dot_dimension_numbers<[1], [0], [0], [1], [0, 0, 1, 1], [], []>} : vector<16x128xf32>, vector<128x128xf32>, vector<16x128xf32> -> vector<16x128xf32>
    %7 = arith.addf %3, %6 : vector<16x128xf32>
    %c0_6 = arith.constant 0 : index
    %c0_7 = arith.constant 0 : index
    %8 = vector.load %arg8[%c0_6, %c0_7] : memref<16x128xf32, #tpu.memory_space<vmem>>, vector<16x128xf32>
    tpu.vector_store %arg8[%c0_6, %c0_7], %7 {strides = array<i32>} : memref<16x128xf32, #tpu.memory_space<vmem>>, vector<16x128xf32>,
    %c0_i32_8 = arith.constant 0 : i32
    %9 = arith.cmpi eq, %arg3, %c0_i32_8 : i32
    %10 = arith.extui %9 : i1 to i32
    %c0_i32_9 = arith.constant 0 : i32
    %11 = arith.cmpi ne, %10, %c0_i32_9 : i32
    scf.if %11 {
      %c0_10 = arith.constant 0 : index
      %c0_11 = arith.constant 0 : index
      %12 = vector.load %arg8[%c0_10, %c0_11] : memref<16x128xf32, #tpu.memory_space<vmem>>, vector<16x128xf32>
      %c0_12 = arith.constant 0 : index
      %c0_13 = arith.constant 0 : index
      %13 = vector.load %arg6[%c0_12, %c0_13] : memref<1x128xf32, #tpu.memory_space<vmem>>, vector<1x128xf32>
      %14 = vector.broadcast %13 : vector<1x128xf32> to vector<16x128xf32>
      %15 = arith.addf %12, %14 : vector<16x128xf32>
      %c0_14 = arith.constant 0 : index
      %c0_15 = arith.constant 0 : index
      %c0_16 = arith.constant 0 : index
      %16 = vector.load %arg7[%c0_14, %c0_15, %c0_16] : memref<1x16x128xf32, #tpu.memory_space<vmem>>, vector<1x16x128xf32>
      %17 = vector.shape_cast %16 : vector<1x16x128xf32> to vector<16x128xf32>
      %18 = vector.shape_cast %15 : vector<16x128xf32> to vector<1x16x128xf32>
      tpu.vector_store %arg7[%c0_14, %c0_15, %c0_16], %18 {strides = array<i32>} : memref<1x16x128xf32, #tpu.memory_space<vmem>>, vector<1x16x128xf32>,
    } else {
    }
    return
  }
  func.func @transform_0(%arg0: i32, %arg1: i32, %arg2: i32, %arg3: i32) -> (i32, i32) {
    %c0_i32 = arith.constant 0 : i32
    return %arg1, %arg3 : i32, i32
  }
  func.func @transform_1(%arg0: i32, %arg1: i32, %arg2: i32, %arg3: i32) -> (i32, i32) {
    %c1_i32 = arith.constant 1 : i32
    %0 = arith.muli %arg0, %c1_i32 : i32
    %1 = arith.addi %0, %arg2 : i32
    %c0_i32 = arith.constant 0 : i32
    return %arg3, %1 : i32, i32
  }
  func.func @transform_2(%arg0: i32, %arg1: i32, %arg2: i32, %arg3: i32) -> (i32, i32) {
    %c1_i32 = arith.constant 1 : i32
    %0 = arith.muli %arg0, %c1_i32 : i32
    %1 = arith.addi %0, %arg2 : i32
    %c0_i32 = arith.constant 0 : i32
    %c0_i32_0 = arith.constant 0 : i32
    return %c0_i32, %1 : i32, i32
  }
  func.func @transform_3(%arg0: i32, %arg1: i32, %arg2: i32, %arg3: i32) -> (i32, i32, i32) {
    %c0_i32 = arith.constant 0 : i32
    return %arg0, %arg1, %arg2 : i32, i32, i32
  }
}

</mosaic_0001>

<llo_original>
// kernel: tpu_custom_call.1
$region0: #{tpu_custom_call.1}
  #allocation0 [shape = 'u32[]', space=smem, size = 0x4, offset = 0x4, fixed_abs, tag = 'smem constant byte address 0x4 - core index']
  #allocation1 [shape = 'u32[144,128]{1,0:T(1,128)}', space=vmem, size = 0x12000, scoped, tag = 'internal scratch']
  #allocation2 [shape = 'f32[16,128]{1,0:T(8,128)}', space=vmem, size = 0x2000, scoped, tag = 'scratch operand']
  %s0 = inlined_call_operand.hbm [shape: f32[16,128], index: 0, kind: input, shape index: {}]
  %s1 = inlined_call_operand.hbm [shape: f32[128,384], index: 1, kind: input, shape index: {}]
  %s2 = inlined_call_operand.vmem [shape: f32[1,384], index: 2, kind: input, shape index: {}]
  %s3 = inlined_call_operand.hbm [shape: f32[3,16,128], index: 3, kind: output, shape index: {}]
  %s4 = sld [smem:[#allocation0]]
  $region61: #{tpu_custom_call.1} parent=0
    _
  %s6 = ssub.s32 1, %s4
  %s7 = scalar_select 0, %s6, %s4
  $region1: #{tpu_custom_call.1} parent=0
    #allocation3 [shape = 'u8[8192]{0}', space=vmem, size = 0x2000, scoped, tag = 'input window, operand 0, single buffered']
    #allocation4 [shape = 's32[2]{0}', space=sflag, size = 0x8, scoped, tag = 'scoped memory for tpu_custom_call.1']
    #allocation5 [shape = 's32[2]{0}', space=sflag, size = 0x8, scoped, tag = 'scoped memory for tpu_custom_call.1']
    #allocation6 [shape = 'u8[131072]{0}', space=vmem, size = 0x20000, scoped, tag = 'input window, operand 1']
    #allocation7 [shape = 's32[2]{0}', space=sflag, size = 0x8, scoped, tag = 'scoped memory for tpu_custom_call.1']
    #allocation8 [shape = 'u8[16384]{0}', space=vmem, size = 0x4000, scoped, tag = 'output window, operand 0']
    %8 = vsyncpa [#allocation4], 0
    %9 = vsyncpa [#allocation7], 0
    %s10 = scalar_lea.sflag [#allocation7], 1
    %11 = vsyncpa %s10, 0
    %12 = vsyncpa [#allocation5], 0
    %s13 = scalar_lea.sflag [#allocation5], 1
    %14 = vsyncpa %s13, 0
    loop: start=0, step=1, limit=5
    $region2: #{tpu_custom_call.1} parent=1 // loop_pre_header
      _
    $region3: #{tpu_custom_call.1} parent=1 // loop_header
      %s16 = sphi 0, %s20
      %p17 = scmp.ge.s32.totalorder %s16, 5
      %s23 = sphi 0, %s49
      %s24 = sphi 0, %s45
      %s25 = sphi 0, %s41
      %s26 = sphi 0, %s37
      %s27 = sphi 0, %s23
      %s28 = sphi 0, %s24
      %s29 = sphi 0, %s25
      %s30 = sphi 0, %s26
      %s31 = sphi 0, %s27
      %s32 = sphi 0, %s28
      %s33 = sphi 0, %s29
      %s34 = sphi 0, %s30
      %s54 = sphi 0, %s56
      %s57 = sphi 0, %s54
      %s58 = sphi 0, %s57
      %s74 = sphi 0, %s58
      %s84 = sphi 0, %s86
      %s87 = sphi 0, %s84
      %s88 = sphi 0, %s87
      %s104 = sphi 0, %s88
      %s112 = sphi 0, %s114
      %s115 = sphi 0, %s112
      %s116 = sphi 0, %s115
      %s132 = sphi 0, %s116
      %s142 = sphi 0, %s144
      %s145 = sphi 0, %s142
      %s146 = sphi 0, %s145
      %s162 = sphi 0, %s146
    $region4: #{tpu_custom_call.1} parent=1 // loop_header_branch
      %19 = sbr.rel (%p17) target = $region8
    $region5: #{tpu_custom_call.1} parent=1 // loop_body
      %s21 = ssub.s32 %s16, 1
      %s22 = ssub.s32 %s16, 2
      %s35 = sadd.s32 1, %s26
      %p36 = scmp.ge.s32.totalorder %s35, 1
      %s37 = scalar_select %p36, 0, %s35
      %s38 = sadd.s32 1, %s25
      %s39 = scalar_select %p36, %s38, %s25
      %p40 = scmp.ge.s32.totalorder %s39, 1
      %s41 = scalar_select %p40, 0, %s39
      %s42 = sadd.s32 1, %s24
      %s43 = scalar_select %p40, %s42, %s24
      %p44 = scmp.ge.s32.totalorder %s43, 1
      %s45 = scalar_select %p44, 0, %s43
      %s46 = sadd.s32 1, %s23
      %s47 = scalar_select %p44, %s46, %s23
      %p48 = scmp.ge.s32.totalorder %s47, 3
      %s49 = scalar_select %p48, 0, %s47
      %s50 = ssub.s32 %s24, %s45
      %s51 = ssub.s32 %s26, %s37
      %s52 = sor.u32 %s50, %s51
      %p53 = scmp.eq.s32.totalorder %s52, 0
      %s55 = sadd.s32 %s54, 1
      %s56 = scalar_select %p53, %s54, %s55
      %p59 = pneg %p53
      %p60 = scmp.eq.s32.totalorder %s16, 2
      %p61 = por %p59, %p60
      %p62 = scmp.ne.s32.totalorder %s54, %s57
      %p63 = scmp.eq.s32.totalorder %s16, 0
      %p64 = por %p62, %p63
      %p65 = scmp.ne.s32.totalorder %s54, %s57
      %p66 = scmp.eq.s32.totalorder %s21, 2
      %p67 = por %p65, %p66
      %p68 = scmp.ne.s32.totalorder %s57, %s58
      %p69 = scmp.eq.s32.totalorder %s21, 0
      %p70 = por %p68, %p69
      %p71 = scmp.ne.s32.totalorder %s57, %s58
      %p72 = scmp.eq.s32.totalorder %s22, 2
      %p73 = por %p71, %p72
      %p75 = scmp.ne.s32.totalorder %s58, %s74
      %p76 = scmp.eq.s32.totalorder %s22, 0
      %p77 = por %p75, %p76
      %s78 = sadd.s32 %s23, %s25
      %s79 = sadd.s32 %s49, %s41
      %s80 = ssub.s32 %s26, %s37
      %s81 = ssub.s32 %s78, %s79
      %s82 = sor.u32 %s80, %s81
      %p83 = scmp.eq.s32.totalorder %s82, 0
      %s85 = sadd.s32 %s84, 1
      %s86 = scalar_select %p83, %s84, %s85
      %p89 = pneg %p83
      %p90 = scmp.eq.s32.totalorder %s16, 2
      %p91 = por %p89, %p90
      %p92 = scmp.ne.s32.totalorder %s84, %s87
      %p93 = scmp.eq.s32.totalorder %s16, 0
      %p94 = por %p92, %p93
      %p95 = scmp.ne.s32.totalorder %s84, %s87
      %p96 = scmp.eq.s32.totalorder %s21, 2
      %p97 = por %p95, %p96
      %p98 = scmp.ne.s32.totalorder %s87, %s88
      %p99 = scmp.eq.s32.totalorder %s21, 0
      %p100 = por %p98, %p99
      %p101 = scmp.ne.s32.totalorder %s87, %s88
      %p102 = scmp.eq.s32.totalorder %s22, 2
      %p103 = por %p101, %p102
      %p105 = scmp.ne.s32.totalorder %s88, %s104
      %p106 = scmp.eq.s32.totalorder %s22, 0
      %p107 = por %p105, %p106
      %s108 = sadd.s32 %s23, %s25
      %s109 = sadd.s32 %s49, %s41
      %s110 = ssub.s32 %s108, %s109
      %p111 = scmp.eq.s32.totalorder %s110, 0
      %s113 = sadd.s32 %s112, 1
      %s114 = scalar_select %p111, %s112, %s113
      %p117 = pneg %p111
      %p118 = scmp.eq.s32.totalorder %s16, 2
      %p119 = por %p117, %p118
      %p120 = scmp.ne.s32.totalorder %s112, %s115
      %p121 = scmp.eq.s32.totalorder %s16, 0
      %p122 = por %p120, %p121
      %p123 = scmp.ne.s32.totalorder %s112, %s115
      %p124 = scmp.eq.s32.totalorder %s21, 2
      %p125 = por %p123, %p124
      %p126 = scmp.ne.s32.totalorder %s115, %s116
      %p127 = scmp.eq.s32.totalorder %s21, 0
      %p128 = por %p126, %p127
      %p129 = scmp.ne.s32.totalorder %s115, %s116
      %p130 = scmp.eq.s32.totalorder %s22, 2
      %p131 = por %p129, %p130
      %p133 = scmp.ne.s32.totalorder %s116, %s132
      %p134 = scmp.eq.s32.totalorder %s22, 0
      %p135 = por %p133, %p134
      %s136 = ssub.s32 %s23, %s49
      %s137 = ssub.s32 %s24, %s45
      %s138 = sor.u32 %s136, %s137
      %s139 = ssub.s32 %s25, %s41
      %s140 = sor.u32 %s138, %s139
      %p141 = scmp.eq.s32.totalorder %s140, 0
      %s143 = sadd.s32 %s142, 1
      %s144 = scalar_select %p141, %s142, %s143
      %p147 = pneg %p141
      %p148 = scmp.eq.s32.totalorder %s16, 2
      %p149 = por %p147, %p148
      %p150 = scmp.ne.s32.totalorder %s142, %s145
      %p151 = scmp.eq.s32.totalorder %s16, 0
      %p152 = por %p150, %p151
      %p153 = scmp.ne.s32.totalorder %s142, %s145
      %p154 = scmp.eq.s32.totalorder %s21, 2
      %p155 = por %p153, %p154
      %p156 = scmp.ne.s32.totalorder %s145, %s146
      %p157 = scmp.eq.s32.totalorder %s21, 0
      %p158 = por %p156, %p157
      %p159 = scmp.ne.s32.totalorder %s145, %s146
      %p160 = scmp.eq.s32.totalorder %s22, 2
      %p161 = por %p159, %p160
      %p163 = scmp.ne.s32.totalorder %s146, %s162
      %p164 = scmp.eq.s32.totalorder %s22, 0
      %p165 = por %p163, %p164
      %p166 = scmp.le.s32.totalorder 1, %s16
      %p167 = scmp.lt.s32.totalorder %s16, 4
      %p168 = pnand %p166, %p167
      %p169 = pneg %p168
      // Predicated region
      $region9: #{tpu_custom_call.1} parent=5 // pred_check
        _
      $region10: #{tpu_custom_call.1} parent=5 // pred_check_branch
        %171 = sbr.rel (%p168) target = $region12
      $region11: #{tpu_custom_call.1} parent=5 // pred_region
        %s172 = ssub.s32 %s16, 1
        // Predicated region
        $region13: #{tpu_custom_call.1} parent=11 // pred_check
          %p173 = pneg %p70
        $region14: #{tpu_custom_call.1} parent=11 // pred_check_branch
          %175 = sbr.rel (%p173) target = $region16
        $region15: #{tpu_custom_call.1} parent=11 // pred_region
          %s176 = smul.u32 2, %s28
          %s178 = ssub.s32 256, 256
          %179 = vsyncadd [#allocation4], %s178
          %s180 = sadd.s32 %s30, %s176
          %s181 = smul.addr %s180, 128
          %s182 = scalar_lea.hbm %s0, %s181
          %s183 = sshll.u32 [#allocation3], 4
          %s184 = int_to_ptr.vmem [resolvable:$true] %s183
          %189 = dma.hbm_to_vmem [thread:$0]  %s182, 256, %s184, [#allocation4], 128, 128, 8
        $region16: #{tpu_custom_call.1} parent=11 // pred_fallthru
          _
      $region12: #{tpu_custom_call.1} parent=5 // pred_fallthru
        _
      %p190 = scmp.lt.s32.totalorder %s16, 3
      // Predicated region
      $region17: #{tpu_custom_call.1} parent=5 // pred_check
        %p191 = pneg %p190
      $region18: #{tpu_custom_call.1} parent=5 // pred_check_branch
        %193 = sbr.rel (%p191) target = $region20
      $region19: #{tpu_custom_call.1} parent=5 // pred_region
        // Predicated region
        $region21: #{tpu_custom_call.1} parent=19 // pred_check
          %p194 = pneg %p94
        $region22: #{tpu_custom_call.1} parent=19 // pred_check_branch
          %196 = sbr.rel (%p194) target = $region24
        $region23: #{tpu_custom_call.1} parent=19 // pred_region
          %s197 = sand.u32 %s84, 1
          %s198 = scalar_lea.sflag [#allocation7], %s197
          %s199 = sand.u32 %s84, 1
          %s200 = smul.addr %s199, 128
          %s201 = scalar_lea.vmem [#allocation6], %s200
          %s202 = sadd.s32 %s23, %s25
          %s203 = smul.u32 16, %s26
          %s205 = ssub.s32 2048, 2048
          %206 = vsyncadd %s198, %s205
          %s207 = smul.addr %s203, 3
          %s208 = sadd.s32 %s202, %s207
          %s209 = smul.addr %s208, 128
          %s210 = scalar_lea.hbm %s1, %s209
          %s211 = sshll.u32 %s201, 4
          %s212 = int_to_ptr.vmem [resolvable:$true] %s211
          %217 = dma.hbm_to_vmem [thread:$0]  %s210, 2048, %s212, %s198, 384, 128, 8
        $region24: #{tpu_custom_call.1} parent=19 // pred_fallthru
          _
        // Predicated region
        $region25: #{tpu_custom_call.1} parent=19 // pred_check
          %p218 = pneg %p122
        $region26: #{tpu_custom_call.1} parent=19 // pred_check_branch
          %220 = sbr.rel (%p218) target = $region28
        $region27: #{tpu_custom_call.1} parent=19 // pred_region
          %s221 = sadd.s32 %s23, %s25
          %p222 = scmp.lt.s32.totalorder %s221, 2
          %s223 = scalar_select %p222, %s221, 2
          %s224 = scalar_lea.vmem %s2, %s223
          %s225 = sadd.s32 %s23, %s25
        $region28: #{tpu_custom_call.1} parent=19 // pred_fallthru
          _
      $region20: #{tpu_custom_call.1} parent=5 // pred_fallthru
        _
      %p226 = scmp.le.s32.totalorder 1, %s16
      %p227 = scmp.lt.s32.totalorder %s16, 4
      %p228 = pnand %p226, %p227
      %p229 = pneg %p228
      // Predicated region
      $region29: #{tpu_custom_call.1} parent=5 // pred_check
        _
      $region30: #{tpu_custom_call.1} parent=5 // pred_check_branch
        %231 = sbr.rel (%p228) target = $region32
      $region31: #{tpu_custom_call.1} parent=5 // pred_region
        %s232 = ssub.s32 %s16, 1
        // Predicated region
        $region33: #{tpu_custom_call.1} parent=31 // pred_check
          %p233 = pneg %p70
        $region34: #{tpu_custom_call.1} parent=31 // pred_check_branch
          %235 = sbr.rel (%p233) target = $region36
        $region35: #{tpu_custom_call.1} parent=31 // pred_region
          %236 = dma.done [#allocation4], 256
        $region36: #{tpu_custom_call.1} parent=31 // pred_fallthru
          _
        %s237 = sand.u32 %s87, 1
        %s238 = scalar_lea.sflag [#allocation7], %s237
        %s239 = sand.u32 %s87, 1
        %s240 = smul.addr %s239, 128
        %s241 = scalar_lea.vmem [#allocation6], %s240
        // Predicated region
        $region37: #{tpu_custom_call.1} parent=31 // pred_check
          %p242 = pneg %p100
        $region38: #{tpu_custom_call.1} parent=31 // pred_check_branch
          %244 = sbr.rel (%p242) target = $region40
        $region39: #{tpu_custom_call.1} parent=31 // pred_region
          %245 = dma.done %s238, 2048
        $region40: #{tpu_custom_call.1} parent=31 // pred_fallthru
          _
        %p246 = pneg %p70
        %p247 = pneg %p67
        %s248 = sand.u32 %s87, 1
        %s249 = scalar_lea.sflag [#allocation7], %s248
        %s250 = sand.u32 %s87, 1
        %s251 = smul.addr %s250, 128
        %s252 = scalar_lea.vmem [#allocation6], %s251
        %p253 = pneg %p100
        %p254 = pneg %p97
        %s255 = sadd.s32 %s27, %s29
        %p256 = scmp.lt.s32.totalorder %s255, 2
        %s257 = scalar_select %p256, %s255, 2
        %s258 = scalar_lea.vmem %s2, %s257
        %p259 = pneg %p128
        %p260 = pneg %p125
        %p261 = pneg %p158
        %p262 = pneg %p155
        %s263 = sand.u32 %s145, 1
        %s264 = scalar_lea.sflag [#allocation5], %s263
        %s265 = sand.u32 %s145, 1
        %s266 = smul.addr %s265, 16
        %s267 = scalar_lea.vmem [#allocation8], %s266
        %s268 = smul.u32 2, %s28
        %s269 = sadd.s32 %s27, %s29
        %s270 = smul.u32 16, %s30
        %s271 = sadd.s32 %s27, %s29
        %p272 = scmp.lt.s32.totalorder %s271, 2
        %s273 = scalar_select %p272, %s271, 2
        %s274 = scalar_lea.vmem %s2, %s273
        %s275 = sadd.s32 %s27, %s29
        %s276 = smul.u32 2, %s28
        %p277 = scmp.eq.s32.totalorder %s30, 0
        // Predicated region
        $region41: #{tpu_custom_call.1} parent=31 // pred_check
          %p278 = pneg %p277
        $region42: #{tpu_custom_call.1} parent=31 // pred_check_branch
          %280 = sbr.rel (%p278) target = $region44
        $region43: #{tpu_custom_call.1} parent=31 // pred_region
          %281 = vst [vmem:[#allocation2] sm:$0xff] 0.0
          %282 = vst [vmem:[#allocation2 + $0x8] sm:$0xff] 0.0
        $region44: #{tpu_custom_call.1} parent=31 // pred_fallthru
          _
        %v283 = vld [vmem:[#allocation2] sm:$0xff]
        %v284 = vld [vmem:[#allocation2 + $0x8] sm:$0xff]
        %v285 = vld [vmem:[#allocation3] sm:$0xff]
        %v286 = vld [vmem:[#allocation3 + $0x8] sm:$0xff]
        %v287 = vld [vmem:[%s241] sm:$0xff]
        %v288 = vld [vmem:[%s241 + $0x8] sm:$0xff]
        %v289 = vld [vmem:[%s241 + $0x10] sm:$0xff]
        %v290 = vld [vmem:[%s241 + $0x18] sm:$0xff]
        %v291 = vld [vmem:[%s241 + $0x20] sm:$0xff]
        %v292 = vld [vmem:[%s241 + $0x28] sm:$0xff]
        %v293 = vld [vmem:[%s241 + $0x30] sm:$0xff]
        %v294 = vld [vmem:[%s241 + $0x38] sm:$0xff]
        %v295 = vld [vmem:[%s241 + $0x40] sm:$0xff]
        %v296 = vld [vmem:[%s241 + $0x48] sm:$0xff]
        %v297 = vld [vmem:[%s241 + $0x50] sm:$0xff]
        %v298 = vld [vmem:[%s241 + $0x58] sm:$0xff]
        %v299 = vld [vmem:[%s241 + $0x60] sm:$0xff]
        %v300 = vld [vmem:[%s241 + $0x68] sm:$0xff]
        %v301 = vld [vmem:[%s241 + $0x70] sm:$0xff]
        %v302 = vld [vmem:[%s241 + $0x78] sm:$0xff]
        %303 = vmatprep.subr.mxu0 0.0
        %304 = vmatpush1.msra.mxu0 %v287
        %305 = vmatprep.subr.mxu0 0.0
        %306 = vmatpush1.msra.mxu0 %v288
        %307 = vmatprep.subr.mxu0 0.0
        %308 = vmatpush1.msra.mxu0 %v289
        %309 = vmatprep.subr.mxu0 0.0
        %310 = vmatpush1.msra.mxu0 %v290
        %311 = vmatprep.subr.mxu0 0.0
        %312 = vmatpush1.msra.mxu0 %v291
        %313 = vmatprep.subr.mxu0 0.0
        %314 = vmatpush1.msra.mxu0 %v292
        %315 = vmatprep.subr.mxu0 0.0
        %316 = vmatpush1.msra.mxu0 %v293
        %317 = vmatprep.subr.mxu0 0.0
        %318 = vmatpush1.msra.mxu0 %v294
        %319 = vmatprep.subr.mxu0 0.0
        %320 = vmatpush1.msra.mxu0 %v295
        %321 = vmatprep.subr.mxu0 0.0
        %322 = vmatpush1.msra.mxu0 %v296
        %323 = vmatprep.subr.mxu0 0.0
        %324 = vmatpush1.msra.mxu0 %v297
        %325 = vmatprep.subr.mxu0 0.0
        %326 = vmatpush1.msra.mxu0 %v298
        %327 = vmatprep.subr.mxu0 0.0
        %328 = vmatpush1.msra.mxu0 %v299
        %329 = vmatprep.subr.mxu0 0.0
        %330 = vmatpush1.msra.mxu0 %v300
        %331 = vmatprep.subr.mxu0 0.0
        %332 = vmatpush1.msra.mxu0 %v301
        %333 = vmatprep.subr.mxu0 0.0
        %334 = vmatpush1.msra.mxu0 %v302
        %335 = vmatprep.subr.mxu0 0.0
        %336 = vmatpush1.msra.mxu0 0.0
        %337 = vmatprep.subr.mxu0 0.0
        %338 = vmatpush1.msra.mxu0 0.0
        %339 = vmatprep.subr.mxu0 0.0
        %340 = vmatpush1.msra.mxu0 0.0
        %341 = vmatprep.subr.mxu0 0.0
        %342 = vmatpush1.msra.mxu0 0.0
        %343 = vmatprep.subr.mxu0 0.0
        %344 = vmatpush1.msra.mxu0 0.0
        %345 = vmatprep.subr.mxu0 0.0
        %346 = vmatpush1.msra.mxu0 0.0
        %347 = vmatprep.subr.mxu0 0.0
        %348 = vmatpush1.msra.mxu0 0.0
        %349 = vmatprep.subr.mxu0 0.0
        %350 = vmatpush1.msra.mxu0 0.0
        %351 = vmatprep.subr.mxu0 0.0
        %352 = vmatpush1.msra.mxu0 0.0
        %353 = vmatprep.subr.mxu0 0.0
        %354 = vmatpush1.msra.mxu0 0.0
        %355 = vmatprep.subr.mxu0 0.0
        %356 = vmatpush1.msra.mxu0 0.0
        %357 = vmatprep.subr.mxu0 0.0
        %358 = vmatpush1.msra.mxu0 0.0
        %359 = vmatprep.subr.mxu0 0.0
        %360 = vmatpush1.msra.mxu0 0.0
        %361 = vmatprep.subr.mxu0 0.0
        %362 = vmatpush1.msra.mxu0 0.0
        %363 = vmatprep.subr.mxu0 0.0
        %364 = vmatpush1.msra.mxu0 0.0
        %365 = vmatprep.subr.mxu0 0.0
        %366 = vmatpush1.msra.mxu0 0.0
        %367 = vmatprep.mubr.f32.mxu0 0.0
        %368 = vmatmul.mubr.f32.gmra.mrb[0].mxu0 %v285
        %v369 = vpop.f32.mrb[0].mxu0
        %v370 = vadd.f32 0.0, %v369
        %v371 = vpop.f32.mrb[0].mxu0
        %372 = vmatprep.mubr.f32.mxu0 0.0
        %373 = vmatmul.mubr.f32.gmra.mrb[0].mxu0 %v286
        %v374 = vpop.f32.mrb[0].mxu0
        %v375 = vadd.f32 0.0, %v374
        %v376 = vpop.f32.mrb[0].mxu0
        %377 = vdwg.mxu0
        %v378 = vadd.f32 %v283, %v370
        %v379 = vadd.f32 %v284, %v375
        %380 = vst [vmem:[#allocation2] sm:$0xff] %v378
        %381 = vst [vmem:[#allocation2 + $0x8] sm:$0xff] %v379
        // Predicated region
        $region45: #{tpu_custom_call.1} parent=31 // pred_check
          %p382 = pneg %p277
        $region46: #{tpu_custom_call.1} parent=31 // pred_check_branch
          %384 = sbr.rel (%p382) target = $region48
        $region47: #{tpu_custom_call.1} parent=31 // pred_region
          %v385 = vld [vmem:[#allocation2] sm:$0xff]
          %v386 = vld [vmem:[#allocation2 + $0x8] sm:$0xff]
          %v387 = vld [vmem:[%s274] sm:$0x1]
          %v389 = vlaneseq
          %v390 = vshrl.u32 %v389, 7
          %v391 = vsub.s32 0, %v390
          %v392 = vrot.slane %v387, %v391
          %v394 = vadd.f32 %v385, %v392
          %v395 = vadd.f32 %v386, %v392
          %396 = vst [vmem:[%s267] sm:$0xff] %v394
          %397 = vst [vmem:[%s267 + $0x8] sm:$0xff] %v395
        $region48: #{tpu_custom_call.1} parent=31 // pred_fallthru
          _
        %s398 = sand.u32 %s145, 1
        %s399 = scalar_lea.sflag [#allocation5], %s398
        %s400 = sand.u32 %s145, 1
        %s401 = smul.addr %s400, 16
        %s402 = scalar_lea.vmem [#allocation8], %s401
        // Predicated region
        $region49: #{tpu_custom_call.1} parent=31 // pred_check
          %p403 = pneg %p155
        $region50: #{tpu_custom_call.1} parent=31 // pred_check_branch
          %405 = sbr.rel (%p403) target = $region52
        $region51: #{tpu_custom_call.1} parent=31 // pred_region
          %s406 = smul.u32 2, %s28
          %s408 = ssub.s32 256, 256
          %409 = vsyncadd %s399, %s408
          %s410 = sadd.s32 %s29, %s406
          %s411 = smul.addr %s27, 2
          %s412 = sadd.s32 %s410, %s411
          %s413 = smul.addr %s412, 128
          %s414 = scalar_lea.hbm %s3, %s413
          %s415 = sshll.u32 %s402, 4
          %s416 = int_to_ptr.vmem [resolvable:$true] %s415
          %421 = dma.vmem_to_hbm [thread:$0]  %s416, 256, %s414, %s399, 128, 128, 8
        $region52: #{tpu_custom_call.1} parent=31 // pred_fallthru
          _
      $region32: #{tpu_custom_call.1} parent=5 // pred_fallthru
        _
      %p422 = scmp.le.s32.totalorder 2, %s16
      // Predicated region
      $region53: #{tpu_custom_call.1} parent=5 // pred_check
        %p423 = pneg %p422
      $region54: #{tpu_custom_call.1} parent=5 // pred_check_branch
        %425 = sbr.rel (%p423) target = $region56
      $region55: #{tpu_custom_call.1} parent=5 // pred_region
        %s426 = ssub.s32 %s16, 2
        // Predicated region
        $region57: #{tpu_custom_call.1} parent=55 // pred_check
          %p427 = pneg %p161
        $region58: #{tpu_custom_call.1} parent=55 // pred_check_branch
          %429 = sbr.rel (%p427) target = $region60
        $region59: #{tpu_custom_call.1} parent=55 // pred_region
          %s430 = sand.u32 %s146, 1
          %s431 = scalar_lea.sflag [#allocation5], %s430
          %s432 = sand.u32 %s146, 1
          %s433 = smul.addr %s432, 16
          %s434 = scalar_lea.vmem [#allocation8], %s433
          %435 = dma.done %s431, 256
        $region60: #{tpu_custom_call.1} parent=55 // pred_fallthru
          _
      $region56: #{tpu_custom_call.1} parent=5 // pred_fallthru
        _
    $region6: #{tpu_custom_call.1} parent=1 // loop_footer
      %s20 = sadd.s32 1, %s16
    $region7: #{tpu_custom_call.1} parent=1 // loop_footer_branch
      %15 = sbr.rel target = $region3
    $region8: #{tpu_custom_call.1} parent=1 // loop_exit
      _
    %436 = vsyncpa [#allocation4], 1
    %s437 = scalar_lea.sflag [#allocation4], 1
    %438 = vsyncpa %s437, 1
    %439 = vsyncpa [#allocation7], 1
    %s440 = scalar_lea.sflag [#allocation7], 1
    %441 = vsyncpa %s440, 1
    %442 = vsyncpa [#allocation5], 1
    %s443 = scalar_lea.sflag [#allocation5], 1
    %444 = vsyncpa %s443, 1

</llo_original>
